<compile_context>
chip_gen: v6e
topology: v6e:2x2x1
jax: 0.10.0
libtpu: 0.0.40
codegen_flags: <defaults>
</compile_context>

<pallas_src>
import jax
import jax.numpy as jnp
from jax.experimental import pallas as pl
from jax.experimental.pallas import tpu as pltpu


def _round_up(n, m):
    return ((n + m - 1) // m) * m


_SQRT1_2 = 0.7071067811865476


def _erf_approx(z):
    # Abramowitz & Stegun 7.1.26, |err| <= 1.5e-7.  Avoids lax.erf (no
    # guaranteed Mosaic lowering); uses only exp / mul / div / where.
    a = jnp.abs(z)
    t = 1.0 / (1.0 + 0.3275911 * a)
    poly = t * (0.254829592 + t * (-0.284496736 + t * (1.421413741
              + t * (-1.453152027 + t * 1.061405429))))
    e = 1.0 - poly * jnp.exp(-(a * a))
    return jnp.where(z < 0.0, -e, e)


def _gelu_exact(x):
    # torch.nn.GELU() default = exact erf GELU.
    return 0.5 * x * (1.0 + _erf_approx(x * _SQRT1_2))


def _grouped_expert_ffn_kernel(eid_ref,    # SMEM (T,) int32: expert id per row tile (scalar prefetch)
                               x_ref,      # (tm, Hp)      compute dtype, sorted-by-expert tokens
                               gate_ref,   # (tm, 1)       f32 top-k gate per row
                               w1_ref,     # (Hp, mh_tile) compute dtype
                               b1_ref,     # (1, mh_tile)  f32
                               w2_ref,     # (mh_tile, Hp) compute dtype
                               b2_ref,     # (1, Hp)       f32
                               out_ref,    # (tm, Hp)      f32
                               acc_ref):   # (tm, Hp)      f32 VMEM scratch
    del eid_ref  # consumed only by the index_maps
    m = pl.program_id(1)

    @pl.when(m == 0)
    def _init():
        acc_ref[...] = jnp.zeros_like(acc_ref)

    # Fused expert FFN chunk: Linear -> exact GELU -> Linear (partial over MH).
    h = jnp.dot(x_ref[...], w1_ref[...], preferred_element_type=jnp.float32)
    h = _gelu_exact(h + b1_ref[...])
    acc_ref[...] += jnp.dot(h.astype(w2_ref.dtype), w2_ref[...],
                            preferred_element_type=jnp.float32)

    @pl.when(m == pl.num_programs(1) - 1)
    def _finalize():
        out_ref[...] = ((acc_ref[...] + b2_ref[...]) * gate_ref[...]).astype(out_ref.dtype)


def sparse_moe_forward(x, router_w, w1, b1, w2, b2, k, *,
                       block_tokens=256,      # review: 256-512 rows feeds the 256x256 MXU
                       mh_block=4096,         # set ~1024-2048 for production MH on v7x/v5e
                       compute_dtype=jnp.bfloat16,
                       vmem_limit_bytes=None  # e.g. 64-96 MiB on v5e/v6e, <=48 MiB on v7x
                       ):
    """x: (B,S,H). router_w: (E,H). w1: (E,H,MH). b1: (E,MH). w2: (E,MH,H). b2: (E,H)."""
    B, S, H0 = x.shape
    E = router_w.shape[0]
    MH0 = w1.shape[-1]
    N = B * S
    x_flat = x.reshape(N, H0).astype(jnp.float32)

    # ---- router + top-k gating (XLA glue) ----
    logits = x_flat @ router_w.astype(jnp.float32).T          # (N, E)
    probs = jax.nn.softmax(logits, axis=-1)
    topk_p, topk_i = jax.lax.top_k(probs, k)                   # (N, k)

    # ---- lane-dense padding of hidden / MLP dims ----
    Hp = _round_up(H0, 128)
    mh128 = _round_up(MH0, 128)
    n_chunks = max(1, -(-mh128 // mh_block))
    mh_tile = _round_up(-(-mh128 // n_chunks), 128)
    MHp = mh_tile * n_chunks

    # ---- grouped (sorted-by-expert) row layout ----
    NK = N * k
    tm = min(block_tokens, _round_up(NK, 16))                  # multiple of 16 (bf16 packing)
    R = _round_up(NK, tm) + E * tm                             # static capacity (groups padded to tm)
    T = R // tm                                                # >= 2, so v7x megacore always splits

    e_flat = topk_i.reshape(-1).astype(jnp.int32)              # (NK,)
    g_flat = topk_p.reshape(-1).astype(jnp.float32)
    t_flat = jnp.repeat(jnp.arange(N, dtype=jnp.int32), k)     # token id per assignment

    order = jnp.argsort(e_flat)                                # group rows by expert
    e_sorted = e_flat[order]
    t_sorted = t_flat[order]
    g_sorted = g_flat[order]

    counts = jnp.bincount(e_flat, length=E).astype(jnp.int32)           # per-expert rows
    padded_counts = ((counts + tm - 1) // tm) * tm                      # pad group to tile
    u_starts = jnp.concatenate([jnp.zeros((1,), jnp.int32), jnp.cumsum(counts)[:-1]])
    p_starts = jnp.concatenate([jnp.zeros((1,), jnp.int32), jnp.cumsum(padded_counts)[:-1]])
    dest = p_starts[e_sorted] + (jnp.arange(NK, dtype=jnp.int32) - u_starts[e_sorted])

    x_pad = jnp.zeros((N, Hp), compute_dtype).at[:, :H0].set(x_flat.astype(compute_dtype))
    x_grouped = jnp.zeros((R, Hp), compute_dtype).at[dest].set(x_pad[t_sorted])
    gate_grouped = jnp.zeros((R, 1), jnp.float32).at[dest].set(g_sorted[:, None])
    row_to_token = jnp.zeros((R,), jnp.int32).at[dest].set(t_sorted)

    # Per-row-tile expert id (1-D int32, scalar-prefetched into SMEM).  Unused
    # slack tiles clamp to expert E-1; their rows have gate 0 -> exact zeros.
    p_ends = jnp.cumsum(padded_counts)
    tile_expert = jnp.searchsorted(p_ends, jnp.arange(T, dtype=jnp.int32) * tm, side='right')
    tile_expert = jnp.minimum(tile_expert, E - 1).astype(jnp.int32)

    # ---- expert params: pad to (Hp, MHp) and cast (weights bf16, biases f32) ----
    w1p = jnp.zeros((E, Hp, MHp), compute_dtype).at[:, :H0, :MH0].set(w1.astype(compute_dtype))
    b1p = jnp.zeros((E, 1, MHp), jnp.float32).at[:, 0, :MH0].set(b1.astype(jnp.float32))
    w2p = jnp.zeros((E, MHp, Hp), compute_dtype).at[:, :MH0, :H0].set(w2.astype(compute_dtype))
    b2p = jnp.zeros((E, 1, Hp), jnp.float32).at[:, 0, :H0].set(b2.astype(jnp.float32))

    cp_kwargs = dict(dimension_semantics=("parallel", "arbitrary"))
    if vmem_limit_bytes is not None:
        cp_kwargs["vmem_limit_bytes"] = vmem_limit_bytes

    out_grouped = pl.pallas_call(
        _grouped_expert_ffn_kernel,
        out_shape=jax.ShapeDtypeStruct((R, Hp), jnp.float32),
        grid_spec=pltpu.PrefetchScalarGridSpec(
            num_scalar_prefetch=1,
            grid=(T, n_chunks),
            in_specs=[
                pl.BlockSpec((tm, Hp), lambda t, m, eid: (t, 0)),               # sorted tokens
                pl.BlockSpec((tm, 1), lambda t, m, eid: (t, 0)),                # gate column
                pl.BlockSpec((None, Hp, mh_tile), lambda t, m, eid: (eid[t], 0, m)),   # W1[e] chunk
                pl.BlockSpec((None, 1, mh_tile), lambda t, m, eid: (eid[t], 0, m)),    # b1[e] chunk
                pl.BlockSpec((None, mh_tile, Hp), lambda t, m, eid: (eid[t], m, 0)),   # W2[e] chunk
                pl.BlockSpec((None, 1, Hp), lambda t, m, eid: (eid[t], 0, 0)),         # b2[e]
            ],
            out_specs=pl.BlockSpec((tm, Hp), lambda t, m, eid: (t, 0)),
            scratch_shapes=[pltpu.VMEM((tm, Hp), jnp.float32)],                 # f32 accumulator
        ),
        compiler_params=pltpu.CompilerParams(**cp_kwargs),
    )(tile_expert, x_grouped, gate_grouped, w1p, b1p, w2p, b2p)

    # ---- scatter-add back to token order (padded rows contribute exact zeros) ----
    out_flat = jnp.zeros((N, Hp), jnp.float32).at[row_to_token].add(out_grouped)
    return out_flat[:, :H0].reshape(B, S, H0).astype(x.dtype)


def sparse_moe_reference(x, router_w, w1, b1, w2, b2, k):
    """Pure-JAX f32 reference reproducing the PyTorch forward semantics."""
    B, S, H = x.shape
    E = router_w.shape[0]
    xf = x.reshape(-1, H).astype(jnp.float32)
    probs = jax.nn.softmax(xf @ router_w.T, axis=-1)
    topk_p, topk_i = jax.lax.top_k(probs, k)
    gate = jnp.sum(topk_p[..., None] * jax.nn.one_hot(topk_i, E, dtype=jnp.float32), axis=1)
    out = jnp.zeros_like(xf)
    for e in range(E):
        h = jax.nn.gelu(xf @ w1[e] + b1[e], approximate=False)
        y = h @ w2[e] + b2[e]
        out = out + y * gate[:, e:e + 1]
    return out.reshape(B, S, H)


if __name__ == "__main__":
    # Small shapes consistent with the module's forward:
    # batch=2, seq=8, hidden_dim=32, num_experts=4, mlp_multiplier=2, k=2
    B, S, H = 2, 8, 32
    E, M, K = 4, 2, 2
    MH = M * H

    key = jax.random.PRNGKey(0)
    ks = jax.random.split(key, 6)
    x = jax.random.normal(ks[0], (B, S, H), dtype=jnp.float32)
    # Deterministic synthetic parameters (shapes match the nn.Module __init__).
    router_w = jax.random.normal(ks[1], (E, H), dtype=jnp.float32) * 0.1
    w1 = jax.random.normal(ks[2], (E, H, MH), dtype=jnp.float32) * (1.0 / H) ** 0.5
    b1 = jax.random.normal(ks[3], (E, MH), dtype=jnp.float32) * 0.01
    w2 = jax.random.normal(ks[4], (E, MH, H), dtype=jnp.float32) * (1.0 / MH) ** 0.5
    b2 = jax.random.normal(ks[5], (E, H), dtype=jnp.float32) * 0.01

    ref = sparse_moe_reference(x, router_w, w1, b1, w2, b2, K)

    # f32 compute path: check of the grouping + kernel logic vs the reference.
    out_f32 = jax.block_until_ready(
        sparse_moe_forward(x, router_w, w1, b1, w2, b2, K, compute_dtype=jnp.float32))
    assert out_f32.shape == (B, S, H)
    assert jnp.allclose(out_f32, ref, rtol=1e-2, atol=1e-2), "f32 Pallas output mismatch vs reference"

    # bf16 MXU path (the optimized default): looser tolerance for bf16 rounding.
    out_bf16 = jax.block_until_ready(
        sparse_moe_forward(x, router_w, w1, b1, w2, b2, K))
    assert out_bf16.shape == (B, S, H)
    assert jnp.allclose(out_bf16, ref, rtol=5e-2, atol=5e-2), "bf16 Pallas output mismatch vs reference"

    print("KERNEL_OK")
</pallas_src>

<mosaic_0001>
module attributes {stable_mosaic.version = 11 : i64} {
  func.func @_grouped_expert_ffn_kernel(%arg0: i32, %arg1: i32, %arg2: memref<5xi32, #tpu.memory_space<smem>>, %arg3: memref<32x128xf32, #tpu.memory_space<vmem>>, %arg4: memref<32x1xf32, #tpu.memory_space<vmem>>, %arg5: memref<1x128x128xf32, #tpu.memory_space<vmem>>, %arg6: memref<1x1x128xf32, #tpu.memory_space<vmem>>, %arg7: memref<1x128x128xf32, #tpu.memory_space<vmem>>, %arg8: memref<1x1x128xf32, #tpu.memory_space<vmem>>, %arg9: memref<32x128xf32, #tpu.memory_space<vmem>>, %arg10: memref<32x128xf32, #tpu.memory_space<vmem>>) attributes {dimension_semantics = [#tpu.dimension_semantics<parallel>, #tpu.dimension_semantics<arbitrary>], iteration_bounds = array<i64: 5, 1>, scalar_prefetch = 1 : i64, scratch_operands = 1 : i64, tpu.core_type = #tpu.core_type<tc>, window_params = [{transform_indices = @transform_0, window_bounds = array<i64: 32, 128>}, {transform_indices = @transform_1, window_bounds = array<i64: 32, 1>}, {transform_indices = @transform_2, window_bounds = array<i64: 1, 128, 128>}, {transform_indices = @transform_3, window_bounds = array<i64: 1, 1, 128>}, {transform_indices = @transform_4, window_bounds = array<i64: 1, 128, 128>}, {transform_indices = @transform_5, window_bounds = array<i64: 1, 1, 128>}, {transform_indices = @transform_6, window_bounds = array<i64: 32, 128>}]} {
    %c0_i32 = arith.constant 0 : i32
    %0 = arith.cmpi eq, %arg1, %c0_i32 : i32
    %1 = arith.extui %0 : i1 to i32
    %c0_i32_0 = arith.constant 0 : i32
    %2 = arith.cmpi ne, %1, %c0_i32_0 : i32
    scf.if %2 {
      %cst_33 = arith.constant 0.000000e+00 : f32
      %60 = vector.broadcast %cst_33 : f32 to vector<32x128xf32>
      %c0_34 = arith.constant 0 : index
      %c0_35 = arith.constant 0 : index
      %61 = vector.load %arg10[%c0_34, %c0_35] : memref<32x128xf32, #tpu.memory_space<vmem>>, vector<32x128xf32>
      tpu.vector_store %arg10[%c0_34, %c0_35], %60 {strides = array<i32>} : memref<32x128xf32, #tpu.memory_space<vmem>>, vector<32x128xf32>,
    } else {
    }
    %c0 = arith.constant 0 : index
    %c0_1 = arith.constant 0 : index
    %3 = vector.load %arg3[%c0, %c0_1] : memref<32x128xf32, #tpu.memory_space<vmem>>, vector<32x128xf32>
    %c0_2 = arith.constant 0 : index
    %c0_3 = arith.constant 0 : index
    %c0_4 = arith.constant 0 : index
    %4 = vector.load %arg5[%c0_2, %c0_3, %c0_4] : memref<1x128x128xf32, #tpu.memory_space<vmem>>, vector<1x128x128xf32>
    %5 = vector.shape_cast %4 : vector<1x128x128xf32> to vector<128x128xf32>
    %cst = arith.constant dense<0.000000e+00> : vector<32x128xf32>
    %6 = tpu.matmul %3, %5, %cst {dimension_numbers = #tpu.dot_dimension_numbers<[1], [0], [0], [1], [0, 0, 1, 1], [], []>} : vector<32x128xf32>, vector<128x128xf32>, vector<32x128xf32> -> vector<32x128xf32>
    %c0_5 = arith.constant 0 : index
    %c0_6 = arith.constant 0 : index
    %c0_7 = arith.constant 0 : index
    %7 = vector.load %arg6[%c0_5, %c0_6, %c0_7] : memref<1x1x128xf32, #tpu.memory_space<vmem>>, vector<1x1x128xf32>
    %8 = vector.shape_cast %7 : vector<1x1x128xf32> to vector<1x128xf32>
    %9 = vector.broadcast %8 : vector<1x128xf32> to vector<32x128xf32>
    %10 = arith.addf %6, %9 : vector<32x128xf32>
    %cst_8 = arith.constant 5.000000e-01 : f32
    %11 = vector.broadcast %cst_8 : f32 to vector<32x128xf32>
    %12 = arith.mulf %11, %10 : vector<32x128xf32>
    %cst_9 = arith.constant 0.707106769 : f32
    %13 = vector.broadcast %cst_9 : f32 to vector<32x128xf32>
    %14 = arith.mulf %10, %13 : vector<32x128xf32>
    %15 = math.absf %14 : vector<32x128xf32>
    %cst_10 = arith.constant 0.327591091 : f32
    %16 = vector.broadcast %cst_10 : f32 to vector<32x128xf32>
    %17 = arith.mulf %16, %15 : vector<32x128xf32>
    %cst_11 = arith.constant 1.000000e+00 : f32
    %18 = vector.broadcast %cst_11 : f32 to vector<32x128xf32>
    %19 = arith.addf %18, %17 : vector<32x128xf32>
    %cst_12 = arith.constant 1.000000e+00 : f32
    %20 = vector.broadcast %cst_12 : f32 to vector<32x128xf32>
    %21 = arith.divf %20, %19 : vector<32x128xf32>
    %cst_13 = arith.constant 1.06140542 : f32
    %22 = vector.broadcast %cst_13 : f32 to vector<32x128xf32>
    %23 = arith.mulf %21, %22 : vector<32x128xf32>
    %cst_14 = arith.constant -1.45315206 : f32
    %24 = vector.broadcast %cst_14 : f32 to vector<32x128xf32>
    %25 = arith.addf %24, %23 : vector<32x128xf32>
    %26 = arith.mulf %21, %25 : vector<32x128xf32>
    %cst_15 = arith.constant 1.42141378 : f32
    %27 = vector.broadcast %cst_15 : f32 to vector<32x128xf32>
    %28 = arith.addf %27, %26 : vector<32x128xf32>
    %29 = arith.mulf %21, %28 : vector<32x128xf32>
    %cst_16 = arith.constant -0.284496725 : f32
    %30 = vector.broadcast %cst_16 : f32 to vector<32x128xf32>
    %31 = arith.addf %30, %29 : vector<32x128xf32>
    %32 = arith.mulf %21, %31 : vector<32x128xf32>
    %cst_17 = arith.constant 0.254829586 : f32
    %33 = vector.broadcast %cst_17 : f32 to vector<32x128xf32>
    %34 = arith.addf %33, %32 : vector<32x128xf32>
    %35 = arith.mulf %21, %34 : vector<32x128xf32>
    %36 = arith.mulf %15, %15 : vector<32x128xf32>
    %cst_18 = arith.constant 0.000000e+00 : f32
    %37 = vector.broadcast %cst_18 : f32 to vector<32x128xf32>
    %38 = arith.subf %37, %36 : vector<32x128xf32>
    %39 = math.exp %38 : vector<32x128xf32>
    %40 = arith.mulf %35, %39 : vector<32x128xf32>
    %cst_19 = arith.constant 1.000000e+00 : f32
    %41 = vector.broadcast %cst_19 : f32 to vector<32x128xf32>
    %42 = arith.subf %41, %40 : vector<32x128xf32>
    %cst_20 = arith.constant 0.000000e+00 : f32
    %43 = vector.broadcast %cst_20 : f32 to vector<32x128xf32>
    %44 = arith.cmpf olt, %14, %43 : vector<32x128xf32>
    %cst_21 = arith.constant 0.000000e+00 : f32
    %45 = vector.broadcast %cst_21 : f32 to vector<32x128xf32>
    %46 = arith.subf %45, %42 : vector<32x128xf32>
    %47 = arith.select %44, %46, %42 : vector<32x128xi1>, vector<32x128xf32>
    %cst_22 = arith.constant 1.000000e+00 : f32
    %48 = vector.broadcast %cst_22 : f32 to vector<32x128xf32>
    %49 = arith.addf %48, %47 : vector<32x128xf32>
    %50 = arith.mulf %12, %49 : vector<32x128xf32>
    %c0_23 = arith.constant 0 : index
    %c0_24 = arith.constant 0 : index
    %51 = vector.load %arg10[%c0_23, %c0_24] : memref<32x128xf32, #tpu.memory_space<vmem>>, vector<32x128xf32>
    %c0_25 = arith.constant 0 : index
    %c0_26 = arith.constant 0 : index
    %c0_27 = arith.constant 0 : index
    %52 = vector.load %arg7[%c0_25, %c0_26, %c0_27] : memref<1x128x128xf32, #tpu.memory_space<vmem>>, vector<1x128x128xf32>
    %53 = vector.shape_cast %52 : vector<1x128x128xf32> to vector<128x128xf32>
    %cst_28 = arith.constant dense<0.000000e+00> : vector<32x128xf32>
    %54 = tpu.matmul %50, %53, %cst_28 {dimension_numbers = #tpu.dot_dimension_numbers<[1], [0], [0], [1], [0, 0, 1, 1], [], []>} : vector<32x128xf32>, vector<128x128xf32>, vector<32x128xf32> -> vector<32x128xf32>
    %55 = arith.addf %51, %54 : vector<32x128xf32>
    %c0_29 = arith.constant 0 : index
    %c0_30 = arith.constant 0 : index
    %56 = vector.load %arg10[%c0_29, %c0_30] : memref<32x128xf32, #tpu.memory_space<vmem>>, vector<32x128xf32>
    tpu.vector_store %arg10[%c0_29, %c0_30], %55 {strides = array<i32>} : memref<32x128xf32, #tpu.memory_space<vmem>>, vector<32x128xf32>,
    %c0_i32_31 = arith.constant 0 : i32
    %57 = arith.cmpi eq, %arg1, %c0_i32_31 : i32
    %58 = arith.extui %57 : i1 to i32
    %c0_i32_32 = arith.constant 0 : i32
    %59 = arith.cmpi ne, %58, %c0_i32_32 : i32
    scf.if %59 {
      %c0_33 = arith.constant 0 : index
      %c0_34 = arith.constant 0 : index
      %60 = vector.load %arg10[%c0_33, %c0_34] : memref<32x128xf32, #tpu.memory_space<vmem>>, vector<32x128xf32>
      %c0_35 = arith.constant 0 : index
      %c0_36 = arith.constant 0 : index
      %c0_37 = arith.constant 0 : index
      %61 = vector.load %arg8[%c0_35, %c0_36, %c0_37] : memref<1x1x128xf32, #tpu.memory_space<vmem>>, vector<1x1x128xf32>
      %62 = vector.shape_cast %61 : vector<1x1x128xf32> to vector<1x128xf32>
      %63 = vector.broadcast %62 : vector<1x128xf32> to vector<32x128xf32>
      %64 = arith.addf %60, %63 : vector<32x128xf32>
      %c0_38 = arith.constant 0 : index
      %c0_39 = arith.constant 0 : index
      %65 = vector.load %arg4[%c0_38, %c0_39] : memref<32x1xf32, #tpu.memory_space<vmem>>, vector<32x1xf32>
      %66 = vector.broadcast %65 : vector<32x1xf32> to vector<32x128xf32>
      %67 = arith.mulf %64, %66 : vector<32x128xf32>
      %c0_40 = arith.constant 0 : index
      %c0_41 = arith.constant 0 : index
      %68 = vector.load %arg9[%c0_40, %c0_41] : memref<32x128xf32, #tpu.memory_space<vmem>>, vector<32x128xf32>
      tpu.vector_store %arg9[%c0_40, %c0_41], %67 {strides = array<i32>} : memref<32x128xf32, #tpu.memory_space<vmem>>, vector<32x128xf32>,
    } else {
    }
    return
  }
  func.func @transform_0(%arg0: i32, %arg1: i32, %arg2: memref<5xi32, #tpu.memory_space<smem>>) -> (i32, i32) {
    %c0_i32 = arith.constant 0 : i32
    %c0_i32_0 = arith.constant 0 : i32
    return %arg0, %c0_i32 : i32, i32
  }
  func.func @transform_1(%arg0: i32, %arg1: i32, %arg2: memref<5xi32, #tpu.memory_space<smem>>) -> (i32, i32) {
    %c0_i32 = arith.constant 0 : i32
    %c0_i32_0 = arith.constant 0 : i32
    return %arg0, %c0_i32 : i32, i32
  }
  func.func @transform_2(%arg0: i32, %arg1: i32, %arg2: memref<5xi32, #tpu.memory_space<smem>>) -> (i32, i32, i32) {
    %0 = arith.index_cast %arg0 : i32 to index
    %1 = memref.load %arg2[%0] : memref<5xi32, #tpu.memory_space<smem>>
    %c0_i32 = arith.constant 0 : i32
    %c0_i32_0 = arith.constant 0 : i32
    return %1, %c0_i32, %arg1 : i32, i32, i32
  }
  func.func @transform_3(%arg0: i32, %arg1: i32, %arg2: memref<5xi32, #tpu.memory_space<smem>>) -> (i32, i32, i32) {
    %0 = arith.index_cast %arg0 : i32 to index
    %1 = memref.load %arg2[%0] : memref<5xi32, #tpu.memory_space<smem>>
    %c0_i32 = arith.constant 0 : i32
    %c0_i32_0 = arith.constant 0 : i32
    return %1, %c0_i32, %arg1 : i32, i32, i32
  }
  func.func @transform_4(%arg0: i32, %arg1: i32, %arg2: memref<5xi32, #tpu.memory_space<smem>>) -> (i32, i32, i32) {
    %0 = arith.index_cast %arg0 : i32 to index
    %1 = memref.load %arg2[%0] : memref<5xi32, #tpu.memory_space<smem>>
    %c0_i32 = arith.constant 0 : i32
    %c0_i32_0 = arith.constant 0 : i32
    return %1, %arg1, %c0_i32 : i32, i32, i32
  }
  func.func @transform_5(%arg0: i32, %arg1: i32, %arg2: memref<5xi32, #tpu.memory_space<smem>>) -> (i32, i32, i32) {
    %0 = arith.index_cast %arg0 : i32 to index
    %1 = memref.load %arg2[%0] : memref<5xi32, #tpu.memory_space<smem>>
    %c0_i32 = arith.constant 0 : i32
    %c0_i32_0 = arith.constant 0 : i32
    %c0_i32_1 = arith.constant 0 : i32
    return %1, %c0_i32, %c0_i32_0 : i32, i32, i32
  }
  func.func @transform_6(%arg0: i32, %arg1: i32, %arg2: memref<5xi32, #tpu.memory_space<smem>>) -> (i32, i32) {
    %c0_i32 = arith.constant 0 : i32
    %c0_i32_0 = arith.constant 0 : i32
    return %arg0, %c0_i32 : i32, i32
  }
}

</mosaic_0001>

<llo_original>
// kernel: tpu_custom_call.1
$region0: #{tpu_custom_call.1}
  #allocation0 [shape = 'u32[]', space=smem, size = 0x4, offset = 0x4, fixed_abs, tag = 'smem constant byte address 0x4 - core index']
  #allocation1 [shape = 'u32[144,128]{1,0:T(1,128)}', space=vmem, size = 0x12000, scoped, tag = 'internal scratch']
  #allocation2 [shape = 'f32[32,128]{1,0:T(8,128)}', space=vmem, size = 0x4000, scoped, tag = 'scratch operand']
  #allocation3 [shape = 's32[1]{0}', space=sflag, size = 0x4, scoped, tag = 'scoped memory for tpu_custom_call.1']
  #allocation4 [shape = 'u8[512]{0}', space=smem, size = 0x200, scoped, tag = 'prefetched SMEM operand 0']
  %s0 = inlined_call_operand.vmem [shape: s32[5], index: 0, kind: input, shape index: {}]
  %s1 = inlined_call_operand.vmem [shape: f32[160,128], index: 1, kind: input, shape index: {}]
  %s2 = inlined_call_operand.vmem [shape: f32[160,1], index: 2, kind: input, shape index: {}]
  %s3 = inlined_call_operand.hbm [shape: f32[4,128,128], index: 3, kind: input, shape index: {}]
  %s4 = inlined_call_operand.vmem [shape: f32[4,1,128], index: 4, kind: input, shape index: {}]
  %s5 = inlined_call_operand.hbm [shape: f32[4,128,128], index: 5, kind: input, shape index: {}]
  %s6 = inlined_call_operand.vmem [shape: f32[4,1,128], index: 6, kind: input, shape index: {}]
  %s7 = inlined_call_operand.hbm [shape: f32[160,128], index: 7, kind: output, shape index: {}]
  %s8 = sld [smem:[#allocation0]]
  $region73: #{tpu_custom_call.1} parent=0
    _
  %s10 = ssub.s32 1, %s8
  %s11 = scalar_select 0, %s10, %s8
  %s12 = sshll.u32 %s0, 4
  %s13 = int_to_ptr.vmem [resolvable:$true] %s12
  %15 = dma.vmem_to_smem %s13, 16, [#allocation4], [#allocation3]
  %16 = dma.done [#allocation3], 16
  %17 = sfence
  $region1: #{tpu_custom_call.1} parent=0
    #allocation5 [shape = 'u8[131072]{0}', space=vmem, size = 0x20000, scoped, tag = 'input window, operand 3']
    #allocation6 [shape = 's32[2]{0}', space=sflag, size = 0x8, scoped, tag = 'scoped memory for tpu_custom_call.1']
    #allocation7 [shape = 's32[2]{0}', space=sflag, size = 0x8, scoped, tag = 'scoped memory for tpu_custom_call.1']
    #allocation8 [shape = 'u8[131072]{0}', space=vmem, size = 0x20000, scoped, tag = 'input window, operand 5']
    #allocation9 [shape = 's32[2]{0}', space=sflag, size = 0x8, scoped, tag = 'scoped memory for tpu_custom_call.1']
    #allocation10 [shape = 'u8[32768]{0}', space=vmem, size = 0x8000, scoped, tag = 'output window, operand 0']
    %18 = vsyncpa [#allocation6], 0
    %s19 = scalar_lea.sflag [#allocation6], 1
    %20 = vsyncpa %s19, 0
    %21 = vsyncpa [#allocation9], 0
    %s22 = scalar_lea.sflag [#allocation9], 1
    %23 = vsyncpa %s22, 0
    %24 = vsyncpa [#allocation7], 0
    %s25 = scalar_lea.sflag [#allocation7], 1
    %26 = vsyncpa %s25, 0
    loop: start=0, step=1, limit=7
    $region2: #{tpu_custom_call.1} parent=1 // loop_pre_header
      _
    $region3: #{tpu_custom_call.1} parent=1 // loop_header
      %s28 = sphi 0, %s32
      %p29 = scmp.ge.s32.totalorder %s28, 7
      %s35 = sphi 0, %s47
      %s36 = sphi 0, %s43
      %s37 = sphi 0, %s35
      %s38 = sphi 0, %s36
      %s39 = sphi 0, %s37
      %s40 = sphi 0, %s38
      %s50 = sphi 0, %s52
      %s53 = sphi 0, %s50
      %s54 = sphi 0, %s53
      %s70 = sphi 0, %s54
      %s76 = sphi 0, %s78
      %s79 = sphi 0, %s76
      %s80 = sphi 0, %s79
      %s96 = sphi 0, %s80
      %s106 = sphi 0, %s108
      %s109 = sphi 0, %s106
      %s110 = sphi 0, %s109
      %s126 = sphi 0, %s110
      %s136 = sphi 0, %s138
      %s139 = sphi 0, %s136
      %s140 = sphi 0, %s139
      %s156 = sphi 0, %s140
      %s166 = sphi 0, %s168
      %s169 = sphi 0, %s166
      %s170 = sphi 0, %s169
      %s186 = sphi 0, %s170
      %s194 = sphi 0, %s196
      %s197 = sphi 0, %s194
      %s198 = sphi 0, %s197
      %s214 = sphi 0, %s198
      %s220 = sphi 0, %s222
      %s223 = sphi 0, %s220
      %s224 = sphi 0, %s223
      %s240 = sphi 0, %s224
    $region4: #{tpu_custom_call.1} parent=1 // loop_header_branch
      %31 = sbr.rel (%p29) target = $region8
    $region5: #{tpu_custom_call.1} parent=1 // loop_body
      %s33 = ssub.s32 %s28, 1
      %s34 = ssub.s32 %s28, 2
      %s41 = sadd.s32 1, %s36
      %p42 = scmp.ge.s32.totalorder %s41, 1
      %s43 = scalar_select %p42, 0, %s41
      %s44 = sadd.s32 1, %s35
      %s45 = scalar_select %p42, %s44, %s35
      %p46 = scmp.ge.s32.totalorder %s45, 5
      %s47 = scalar_select %p46, 0, %s45
      %s48 = ssub.s32 %s35, %s47
      %p49 = scmp.eq.s32.totalorder %s48, 0
      %s51 = sadd.s32 %s50, 1
      %s52 = scalar_select %p49, %s50, %s51
      %p55 = pneg %p49
      %p56 = scmp.eq.s32.totalorder %s28, 4
      %p57 = por %p55, %p56
      %p58 = scmp.ne.s32.totalorder %s50, %s53
      %p59 = scmp.eq.s32.totalorder %s28, 0
      %p60 = por %p58, %p59
      %p61 = scmp.ne.s32.totalorder %s50, %s53
      %p62 = scmp.eq.s32.totalorder %s33, 4
      %p63 = por %p61, %p62
      %p64 = scmp.ne.s32.totalorder %s53, %s54
      %p65 = scmp.eq.s32.totalorder %s33, 0
      %p66 = por %p64, %p65
      %p67 = scmp.ne.s32.totalorder %s53, %s54
      %p68 = scmp.eq.s32.totalorder %s34, 4
      %p69 = por %p67, %p68
      %p71 = scmp.ne.s32.totalorder %s54, %s70
      %p72 = scmp.eq.s32.totalorder %s34, 0
      %p73 = por %p71, %p72
      %s74 = ssub.s32 %s35, %s47
      %p75 = scmp.eq.s32.totalorder %s74, 0
      %s77 = sadd.s32 %s76, 1
      %s78 = scalar_select %p75, %s76, %s77
      %p81 = pneg %p75
      %p82 = scmp.eq.s32.totalorder %s28, 4
      %p83 = por %p81, %p82
      %p84 = scmp.ne.s32.totalorder %s76, %s79
      %p85 = scmp.eq.s32.totalorder %s28, 0
      %p86 = por %p84, %p85
      %p87 = scmp.ne.s32.totalorder %s76, %s79
      %p88 = scmp.eq.s32.totalorder %s33, 4
      %p89 = por %p87, %p88
      %p90 = scmp.ne.s32.totalorder %s79, %s80
      %p91 = scmp.eq.s32.totalorder %s33, 0
      %p92 = por %p90, %p91
      %p93 = scmp.ne.s32.totalorder %s79, %s80
      %p94 = scmp.eq.s32.totalorder %s34, 4
      %p95 = por %p93, %p94
      %p97 = scmp.ne.s32.totalorder %s80, %s96
      %p98 = scmp.eq.s32.totalorder %s34, 0
      %p99 = por %p97, %p98
      %s100 = sld [smem:[#allocation4 + %s35]]
      %s101 = sld [smem:[#allocation4 + %s47]]
      %s102 = ssub.s32 %s100, %s101
      %s103 = ssub.s32 %s36, %s43
      %s104 = sor.u32 %s102, %s103
      %p105 = scmp.eq.s32.totalorder %s104, 0
      %s107 = sadd.s32 %s106, 1
      %s108 = scalar_select %p105, %s106, %s107
      %p111 = pneg %p105
      %p112 = scmp.eq.s32.totalorder %s28, 4
      %p113 = por %p111, %p112
      %p114 = scmp.ne.s32.totalorder %s106, %s109
      %p115 = scmp.eq.s32.totalorder %s28, 0
      %p116 = por %p114, %p115
      %p117 = scmp.ne.s32.totalorder %s106, %s109
      %p118 = scmp.eq.s32.totalorder %s33, 4
      %p119 = por %p117, %p118
      %p120 = scmp.ne.s32.totalorder %s109, %s110
      %p121 = scmp.eq.s32.totalorder %s33, 0
      %p122 = por %p120, %p121
      %p123 = scmp.ne.s32.totalorder %s109, %s110
      %p124 = scmp.eq.s32.totalorder %s34, 4
      %p125 = por %p123, %p124
      %p127 = scmp.ne.s32.totalorder %s110, %s126
      %p128 = scmp.eq.s32.totalorder %s34, 0
      %p129 = por %p127, %p128
      %s130 = sld [smem:[#allocation4 + %s35]]
      %s131 = sld [smem:[#allocation4 + %s47]]
      %s132 = ssub.s32 %s130, %s131
      %s133 = ssub.s32 %s36, %s43
      %s134 = sor.u32 %s132, %s133
      %p135 = scmp.eq.s32.totalorder %s134, 0
      %s137 = sadd.s32 %s136, 1
      %s138 = scalar_select %p135, %s136, %s137
      %p141 = pneg %p135
      %p142 = scmp.eq.s32.totalorder %s28, 4
      %p143 = por %p141, %p142
      %p144 = scmp.ne.s32.totalorder %s136, %s139
      %p145 = scmp.eq.s32.totalorder %s28, 0
      %p146 = por %p144, %p145
      %p147 = scmp.ne.s32.totalorder %s136, %s139
      %p148 = scmp.eq.s32.totalorder %s33, 4
      %p149 = por %p147, %p148
      %p150 = scmp.ne.s32.totalorder %s139, %s140
      %p151 = scmp.eq.s32.totalorder %s33, 0
      %p152 = por %p150, %p151
      %p153 = scmp.ne.s32.totalorder %s139, %s140
      %p154 = scmp.eq.s32.totalorder %s34, 4
      %p155 = por %p153, %p154
      %p157 = scmp.ne.s32.totalorder %s140, %s156
      %p158 = scmp.eq.s32.totalorder %s34, 0
      %p159 = por %p157, %p158
      %s160 = sld [smem:[#allocation4 + %s35]]
      %s161 = sld [smem:[#allocation4 + %s47]]
      %s162 = ssub.s32 %s160, %s161
      %s163 = ssub.s32 %s36, %s43
      %s164 = sor.u32 %s162, %s163
      %p165 = scmp.eq.s32.totalorder %s164, 0
      %s167 = sadd.s32 %s166, 1
      %s168 = scalar_select %p165, %s166, %s167
      %p171 = pneg %p165
      %p172 = scmp.eq.s32.totalorder %s28, 4
      %p173 = por %p171, %p172
      %p174 = scmp.ne.s32.totalorder %s166, %s169
      %p175 = scmp.eq.s32.totalorder %s28, 0
      %p176 = por %p174, %p175
      %p177 = scmp.ne.s32.totalorder %s166, %s169
      %p178 = scmp.eq.s32.totalorder %s33, 4
      %p179 = por %p177, %p178
      %p180 = scmp.ne.s32.totalorder %s169, %s170
      %p181 = scmp.eq.s32.totalorder %s33, 0
      %p182 = por %p180, %p181
      %p183 = scmp.ne.s32.totalorder %s169, %s170
      %p184 = scmp.eq.s32.totalorder %s34, 4
      %p185 = por %p183, %p184
      %p187 = scmp.ne.s32.totalorder %s170, %s186
      %p188 = scmp.eq.s32.totalorder %s34, 0
      %p189 = por %p187, %p188
      %s190 = sld [smem:[#allocation4 + %s35]]
      %s191 = sld [smem:[#allocation4 + %s47]]
      %s192 = ssub.s32 %s190, %s191
      %p193 = scmp.eq.s32.totalorder %s192, 0
      %s195 = sadd.s32 %s194, 1
      %s196 = scalar_select %p193, %s194, %s195
      %p199 = pneg %p193
      %p200 = scmp.eq.s32.totalorder %s28, 4
      %p201 = por %p199, %p200
      %p202 = scmp.ne.s32.totalorder %s194, %s197
      %p203 = scmp.eq.s32.totalorder %s28, 0
      %p204 = por %p202, %p203
      %p205 = scmp.ne.s32.totalorder %s194, %s197
      %p206 = scmp.eq.s32.totalorder %s33, 4
      %p207 = por %p205, %p206
      %p208 = scmp.ne.s32.totalorder %s197, %s198
      %p209 = scmp.eq.s32.totalorder %s33, 0
      %p210 = por %p208, %p209
      %p211 = scmp.ne.s32.totalorder %s197, %s198
      %p212 = scmp.eq.s32.totalorder %s34, 4
      %p213 = por %p211, %p212
      %p215 = scmp.ne.s32.totalorder %s198, %s214
      %p216 = scmp.eq.s32.totalorder %s34, 0
      %p217 = por %p215, %p216
      %s218 = ssub.s32 %s35, %s47
      %p219 = scmp.eq.s32.totalorder %s218, 0
      %s221 = sadd.s32 %s220, 1
      %s222 = scalar_select %p219, %s220, %s221
      %p225 = pneg %p219
      %p226 = scmp.eq.s32.totalorder %s28, 4
      %p227 = por %p225, %p226
      %p228 = scmp.ne.s32.totalorder %s220, %s223
      %p229 = scmp.eq.s32.totalorder %s28, 0
      %p230 = por %p228, %p229
      %p231 = scmp.ne.s32.totalorder %s220, %s223
      %p232 = scmp.eq.s32.totalorder %s33, 4
      %p233 = por %p231, %p232
      %p234 = scmp.ne.s32.totalorder %s223, %s224
      %p235 = scmp.eq.s32.totalorder %s33, 0
      %p236 = por %p234, %p235
      %p237 = scmp.ne.s32.totalorder %s223, %s224
      %p238 = scmp.eq.s32.totalorder %s34, 4
      %p239 = por %p237, %p238
      %p241 = scmp.ne.s32.totalorder %s224, %s240
      %p242 = scmp.eq.s32.totalorder %s34, 0
      %p243 = por %p241, %p242
      %p244 = scmp.le.s32.totalorder 1, %s28
      %p245 = scmp.lt.s32.totalorder %s28, 6
      %p246 = pnand %p244, %p245
      %p247 = pneg %p246
      // Predicated region
      $region9: #{tpu_custom_call.1} parent=5 // pred_check
        _
      $region10: #{tpu_custom_call.1} parent=5 // pred_check_branch
        %249 = sbr.rel (%p246) target = $region12
      $region11: #{tpu_custom_call.1} parent=5 // pred_region
        %s250 = ssub.s32 %s28, 1
      $region12: #{tpu_custom_call.1} parent=5 // pred_fallthru
        _
      %p251 = scmp.lt.s32.totalorder %s28, 5
      // Predicated region
      $region13: #{tpu_custom_call.1} parent=5 // pred_check
        %p252 = pneg %p251
      $region14: #{tpu_custom_call.1} parent=5 // pred_check_branch
        %254 = sbr.rel (%p252) target = $region16
      $region15: #{tpu_custom_call.1} parent=5 // pred_region
        // Predicated region
        $region17: #{tpu_custom_call.1} parent=15 // pred_check
          %p255 = pneg %p60
        $region18: #{tpu_custom_call.1} parent=15 // pred_check_branch
          %257 = sbr.rel (%p255) target = $region20
        $region19: #{tpu_custom_call.1} parent=15 // pred_region
          %s258 = smul.u32 4, %s35
          %p259 = scmp.lt.s32.totalorder %s258, 19
          %s260 = scalar_select %p259, %s258, 19
          %s261 = smul.addr %s260, 8
          %s262 = scalar_lea.vmem %s1, %s261
          %s263 = smul.u32 4, %s35
        $region20: #{tpu_custom_call.1} parent=15 // pred_fallthru
          _
        // Predicated region
        $region21: #{tpu_custom_call.1} parent=15 // pred_check
          %p264 = pneg %p86
        $region22: #{tpu_custom_call.1} parent=15 // pred_check_branch
          %266 = sbr.rel (%p264) target = $region24
        $region23: #{tpu_custom_call.1} parent=15 // pred_region
          %s267 = smul.u32 4, %s35
          %p268 = scmp.lt.s32.totalorder %s267, 19
          %s269 = scalar_select %p268, %s267, 19
          %s270 = smul.addr %s269, 8
          %s271 = scalar_lea.vmem %s2, %s270
          %s272 = smul.u32 4, %s35
        $region24: #{tpu_custom_call.1} parent=15 // pred_fallthru
          _
        // Predicated region
        $region25: #{tpu_custom_call.1} parent=15 // pred_check
          %p273 = pneg %p116
        $region26: #{tpu_custom_call.1} parent=15 // pred_check_branch
          %275 = sbr.rel (%p273) target = $region28
        $region27: #{tpu_custom_call.1} parent=15 // pred_region
          %s276 = sand.u32 %s106, 1
          %s277 = scalar_lea.sflag [#allocation6], %s276
          %s278 = sand.u32 %s106, 1
          %s279 = smul.addr %s278, 128
          %s280 = scalar_lea.vmem [#allocation5], %s279
          %s281 = sld [smem:[#allocation4 + %s35]]
          %s283 = ssub.s32 2048, 2048
          %284 = vsyncadd %s277, %s283
          %s285 = smul.addr %s281, 16
          %s286 = sadd.s32 %s36, %s285
          %s287 = smul.addr %s286, 128
          %s288 = scalar_lea.hbm %s3, %s287
          %s289 = sshll.u32 %s280, 4
          %s290 = int_to_ptr.vmem [resolvable:$true] %s289
          %295 = dma.hbm_to_vmem [thread:$0]  %s288, 2048, %s290, %s277, 128, 128, 8
        $region28: #{tpu_custom_call.1} parent=15 // pred_fallthru
          _
        // Predicated region
        $region29: #{tpu_custom_call.1} parent=15 // pred_check
          %p296 = pneg %p146
        $region30: #{tpu_custom_call.1} parent=15 // pred_check_branch
          %298 = sbr.rel (%p296) target = $region32
        $region31: #{tpu_custom_call.1} parent=15 // pred_region
          %s299 = sld [smem:[#allocation4 + %s35]]
          %p300 = scmp.lt.s32.totalorder %s299, 3
          %s301 = scalar_select %p300, %s299, 3
          %p302 = scmp.lt.s32.totalorder %s36, 0
          %s303 = scalar_select %p302, %s36, 0
          %s304 = sadd.s32 %s303, %s301
          %s305 = scalar_lea.vmem %s4, %s304
          %s306 = sld [smem:[#allocation4 + %s35]]
        $region32: #{tpu_custom_call.1} parent=15 // pred_fallthru
          _
        // Predicated region
        $region33: #{tpu_custom_call.1} parent=15 // pred_check
          %p307 = pneg %p176
        $region34: #{tpu_custom_call.1} parent=15 // pred_check_branch
          %309 = sbr.rel (%p307) target = $region36
        $region35: #{tpu_custom_call.1} parent=15 // pred_region
          %s310 = sand.u32 %s166, 1
          %s311 = scalar_lea.sflag [#allocation9], %s310
          %s312 = sand.u32 %s166, 1
          %s313 = smul.addr %s312, 128
          %s314 = scalar_lea.vmem [#allocation8], %s313
          %s315 = sld [smem:[#allocation4 + %s35]]
          %s316 = smul.u32 16, %s36
          %s318 = ssub.s32 2048, 2048
          %319 = vsyncadd %s311, %s318
          %s320 = smul.addr %s315, 16
          %s321 = sadd.s32 %s316, %s320
          %s322 = smul.addr %s321, 128
          %s323 = scalar_lea.hbm %s5, %s322
          %s324 = sshll.u32 %s314, 4
          %s325 = int_to_ptr.vmem [resolvable:$true] %s324
          %330 = dma.hbm_to_vmem [thread:$0]  %s323, 2048, %s325, %s311, 128, 128, 8
        $region36: #{tpu_custom_call.1} parent=15 // pred_fallthru
          _
        // Predicated region
        $region37: #{tpu_custom_call.1} parent=15 // pred_check
          %p331 = pneg %p204
        $region38: #{tpu_custom_call.1} parent=15 // pred_check_branch
          %333 = sbr.rel (%p331) target = $region40
        $region39: #{tpu_custom_call.1} parent=15 // pred_region
          %s334 = sld [smem:[#allocation4 + %s35]]
          %p335 = scmp.lt.s32.totalorder %s334, 3
          %s336 = scalar_select %p335, %s334, 3
          %s337 = scalar_lea.vmem %s6, %s336
          %s338 = sld [smem:[#allocation4 + %s35]]
        $region40: #{tpu_custom_call.1} parent=15 // pred_fallthru
          _
      $region16: #{tpu_custom_call.1} parent=5 // pred_fallthru
        _
      %p339 = scmp.le.s32.totalorder 1, %s28
      %p340 = scmp.lt.s32.totalorder %s28, 6
      %p341 = pnand %p339, %p340
      %p342 = pneg %p341
      // Predicated region
      $region41: #{tpu_custom_call.1} parent=5 // pred_check
        _
      $region42: #{tpu_custom_call.1} parent=5 // pred_check_branch
        %344 = sbr.rel (%p341) target = $region44
      $region43: #{tpu_custom_call.1} parent=5 // pred_region
        %s345 = ssub.s32 %s28, 1
        %s346 = sand.u32 %s109, 1
        %s347 = scalar_lea.sflag [#allocation6], %s346
        %s348 = sand.u32 %s109, 1
        %s349 = smul.addr %s348, 128
        %s350 = scalar_lea.vmem [#allocation5], %s349
        // Predicated region
        $region45: #{tpu_custom_call.1} parent=43 // pred_check
          %p351 = pneg %p122
        $region46: #{tpu_custom_call.1} parent=43 // pred_check_branch
          %353 = sbr.rel (%p351) target = $region48
        $region47: #{tpu_custom_call.1} parent=43 // pred_region
          %354 = dma.done %s347, 2048
        $region48: #{tpu_custom_call.1} parent=43 // pred_fallthru
          _
        %s355 = sand.u32 %s169, 1
        %s356 = scalar_lea.sflag [#allocation9], %s355
        %s357 = sand.u32 %s169, 1
        %s358 = smul.addr %s357, 128
        %s359 = scalar_lea.vmem [#allocation8], %s358
        // Predicated region
        $region49: #{tpu_custom_call.1} parent=43 // pred_check
          %p360 = pneg %p182
        $region50: #{tpu_custom_call.1} parent=43 // pred_check_branch
          %362 = sbr.rel (%p360) target = $region52
        $region51: #{tpu_custom_call.1} parent=43 // pred_region
          %363 = dma.done %s356, 2048
        $region52: #{tpu_custom_call.1} parent=43 // pred_fallthru
          _
        %s364 = smul.u32 4, %s37
        %p365 = scmp.lt.s32.totalorder %s364, 19
        %s366 = scalar_select %p365, %s364, 19
        %s367 = smul.addr %s366, 8
        %s368 = scalar_lea.vmem %s1, %s367
        %p369 = pneg %p66
        %p370 = pneg %p63
        %s371 = smul.u32 4, %s37
        %p372 = scmp.lt.s32.totalorder %s371, 19
        %s373 = scalar_select %p372, %s371, 19
        %s374 = smul.addr %s373, 8
        %s375 = scalar_lea.vmem %s2, %s374
        %p376 = pneg %p92
        %p377 = pneg %p89
        %s378 = sand.u32 %s109, 1
        %s379 = scalar_lea.sflag [#allocation6], %s378
        %s380 = sand.u32 %s109, 1
        %s381 = smul.addr %s380, 128
        %s382 = scalar_lea.vmem [#allocation5], %s381
        %p383 = pneg %p122
        %p384 = pneg %p119
        %s385 = sld [smem:[#allocation4 + %s37]]
        %p386 = scmp.lt.s32.totalorder %s385, 3
        %s387 = scalar_select %p386, %s385, 3
        %p388 = scmp.lt.s32.totalorder %s38, 0
        %s389 = scalar_select %p388, %s38, 0
        %s390 = sadd.s32 %s389, %s387
        %s391 = scalar_lea.vmem %s4, %s390
        %p392 = pneg %p152
        %p393 = pneg %p149
        %s394 = sand.u32 %s169, 1
        %s395 = scalar_lea.sflag [#allocation9], %s394
        %s396 = sand.u32 %s169, 1
        %s397 = smul.addr %s396, 128
        %s398 = scalar_lea.vmem [#allocation8], %s397
        %p399 = pneg %p182
        %p400 = pneg %p179
        %s401 = sld [smem:[#allocation4 + %s37]]
        %p402 = scmp.lt.s32.totalorder %s401, 3
        %s403 = scalar_select %p402, %s401, 3
        %s404 = scalar_lea.vmem %s6, %s403
        %p405 = pneg %p210
        %p406 = pneg %p207
        %p407 = pneg %p236
        %p408 = pneg %p233
        %s409 = sand.u32 %s223, 1
        %s410 = scalar_lea.sflag [#allocation7], %s409
        %s411 = sand.u32 %s223, 1
        %s412 = smul.addr %s411, 32
        %s413 = scalar_lea.vmem [#allocation10], %s412
        %s414 = smul.u32 4, %s37
        %p415 = scmp.lt.s32.totalorder %s414, 19
        %s416 = scalar_select %p415, %s414, 19
        %s417 = smul.addr %s416, 8
        %s418 = scalar_lea.vmem %s1, %s417
        %s419 = smul.u32 4, %s37
        %s420 = smul.u32 4, %s37
        %p421 = scmp.lt.s32.totalorder %s420, 19
        %s422 = scalar_select %p421, %s420, 19
        %s423 = smul.addr %s422, 8
        %s424 = scalar_lea.vmem %s2, %s423
        %s425 = smul.u32 4, %s37
        %s426 = sld [smem:[#allocation4 + %s37]]
        %s427 = sld [smem:[#allocation4 + %s37]]
        %p428 = scmp.lt.s32.totalorder %s427, 3
        %s429 = scalar_select %p428, %s427, 3
        %p430 = scmp.lt.s32.totalorder %s38, 0
        %s431 = scalar_select %p430, %s38, 0
        %s432 = sadd.s32 %s431, %s429
        %s433 = scalar_lea.vmem %s4, %s432
        %s434 = sld [smem:[#allocation4 + %s37]]
        %s435 = sld [smem:[#allocation4 + %s37]]
        %s436 = smul.u32 16, %s38
        %s437 = sld [smem:[#allocation4 + %s37]]
        %p438 = scmp.lt.s32.totalorder %s437, 3
        %s439 = scalar_select %p438, %s437, 3
        %s440 = scalar_lea.vmem %s6, %s439
        %s441 = sld [smem:[#allocation4 + %s37]]
        %s442 = smul.u32 4, %s37
        %p443 = scmp.eq.s32.totalorder %s38, 0
        // Predicated region
        $region53: #{tpu_custom_call.1} parent=43 // pred_check
          %p444 = pneg %p443
        $region54: #{tpu_custom_call.1} parent=43 // pred_check_branch
          %446 = sbr.rel (%p444) target = $region56
        $region55: #{tpu_custom_call.1} parent=43 // pred_region
          %447 = vst [vmem:[#allocation2] sm:$0xff] 0.0
          %448 = vst [vmem:[#allocation2 + $0x8] sm:$0xff] 0.0
          %449 = vst [vmem:[#allocation2 + $0x10] sm:$0xff] 0.0
          %450 = vst [vmem:[#allocation2 + $0x18] sm:$0xff] 0.0
        $region56: #{tpu_custom_call.1} parent=43 // pred_fallthru
          _
        %v451 = vld [vmem:[%s418] sm:$0xff]
        %v452 = vld [vmem:[%s418 + $0x8] sm:$0xff]
        %v453 = vld [vmem:[%s418 + $0x10] sm:$0xff]
        %v454 = vld [vmem:[%s418 + $0x18] sm:$0xff]
        %v455 = vld [vmem:[%s350] sm:$0xff]
        %v456 = vld [vmem:[%s350 + $0x8] sm:$0xff]
        %v457 = vld [vmem:[%s350 + $0x10] sm:$0xff]
        %v458 = vld [vmem:[%s350 + $0x18] sm:$0xff]
        %v459 = vld [vmem:[%s350 + $0x20] sm:$0xff]
        %v460 = vld [vmem:[%s350 + $0x28] sm:$0xff]
        %v461 = vld [vmem:[%s350 + $0x30] sm:$0xff]
        %v462 = vld [vmem:[%s350 + $0x38] sm:$0xff]
        %v463 = vld [vmem:[%s350 + $0x40] sm:$0xff]
        %v464 = vld [vmem:[%s350 + $0x48] sm:$0xff]
        %v465 = vld [vmem:[%s350 + $0x50] sm:$0xff]
        %v466 = vld [vmem:[%s350 + $0x58] sm:$0xff]
        %v467 = vld [vmem:[%s350 + $0x60] sm:$0xff]
        %v468 = vld [vmem:[%s350 + $0x68] sm:$0xff]
        %v469 = vld [vmem:[%s350 + $0x70] sm:$0xff]
        %v470 = vld [vmem:[%s350 + $0x78] sm:$0xff]
        %v471 = vld [vmem:[%s433] sm:$0x1]
        %v473 = vlaneseq
        %v474 = vshrl.u32 %v473, 7
        %v475 = vsub.s32 0, %v474
        %v476 = vrot.slane %v471, %v475
        %478 = vmatprep.subr.mxu0 0.0
        %479 = vmatpush1.msra.mxu0 %v470
        %480 = vmatprep.subr.mxu0 0.0
        %481 = vmatpush1.msra.mxu0 %v469
        %482 = vmatprep.subr.mxu0 0.0
        %483 = vmatpush1.msra.mxu0 %v468
        %484 = vmatprep.subr.mxu0 0.0
        %485 = vmatpush1.msra.mxu0 %v467
        %486 = vmatprep.subr.mxu0 0.0
        %487 = vmatpush1.msra.mxu0 %v466
        %488 = vmatprep.subr.mxu0 0.0
        %489 = vmatpush1.msra.mxu0 %v465
        %490 = vmatprep.subr.mxu0 0.0
        %491 = vmatpush1.msra.mxu0 %v464
        %492 = vmatprep.subr.mxu0 0.0
        %493 = vmatpush1.msra.mxu0 %v463
        %494 = vmatprep.subr.mxu0 0.0
        %495 = vmatpush1.msra.mxu0 %v462
        %496 = vmatprep.subr.mxu0 0.0
        %497 = vmatpush1.msra.mxu0 %v461
        %498 = vmatprep.subr.mxu0 0.0
        %499 = vmatpush1.msra.mxu0 %v460
        %500 = vmatprep.subr.mxu0 0.0
        %501 = vmatpush1.msra.mxu0 %v459
        %502 = vmatprep.subr.mxu0 0.0
        %503 = vmatpush1.msra.mxu0 %v458
        %504 = vmatprep.subr.mxu0 0.0
        %505 = vmatpush1.msra.mxu0 %v457
        %506 = vmatprep.subr.mxu0 0.0
        %507 = vmatpush1.msra.mxu0 %v456
        %508 = vmatprep.subr.mxu0 0.0
        %509 = vmatpush1.msra.mxu0 %v455
        %510 = vmatprep.subr.mxu0 0.0
        %511 = vmatpush2.msra.mxu0 0.0
        %512 = vmatprep.subr.mxu0 0.0
        %513 = vmatpush2.msra.mxu0 0.0
        %514 = vmatprep.subr.mxu0 0.0
        %515 = vmatpush2.msra.mxu0 0.0
        %516 = vmatprep.subr.mxu0 0.0
        %517 = vmatpush2.msra.mxu0 0.0
        %518 = vmatprep.subr.mxu0 0.0
        %519 = vmatpush2.msra.mxu0 0.0
        %520 = vmatprep.subr.mxu0 0.0
        %521 = vmatpush2.msra.mxu0 0.0
        %522 = vmatprep.subr.mxu0 0.0
        %523 = vmatpush2.msra.mxu0 0.0
        %524 = vmatprep.subr.mxu0 0.0
        %525 = vmatpush2.msra.mxu0 0.0
        %526 = vmatprep.subr.mxu0 0.0
        %527 = vmatpush2.msra.mxu0 0.0
        %528 = vmatprep.subr.mxu0 0.0
        %529 = vmatpush2.msra.mxu0 0.0
        %530 = vmatprep.subr.mxu0 0.0
        %531 = vmatpush2.msra.mxu0 0.0
        %532 = vmatprep.subr.mxu0 0.0
        %533 = vmatpush2.msra.mxu0 0.0
        %534 = vmatprep.subr.mxu0 0.0
        %535 = vmatpush2.msra.mxu0 0.0
        %536 = vmatprep.subr.mxu0 0.0
        %537 = vmatpush2.msra.mxu0 0.0
        %538 = vmatprep.subr.mxu0 0.0
        %539 = vmatpush2.msra.mxu0 0.0
        %540 = vmatprep.subr.mxu0 0.0
        %541 = vmatpush2.msra.mxu0 0.0
        %542 = vmatprep.mubr.f32.mxu0 0.0
        %543 = vmatmul.mubr.f32.gmra.mxu0 %v451
        %v544 = vpop.f32.mrf.mxu0
        %v545 = vadd.f32 %v476, %v544
        %v546 = vpop.f32.mrf.mxu0
        %547 = vmatprep.mubr.f32.mxu0 0.0
        %548 = vmatmul.mubr.f32.gmra.mxu0 %v452
        %v549 = vpop.f32.mrf.mxu0
        %v550 = vadd.f32 %v476, %v549
        %v551 = vpop.f32.mrf.mxu0
        %552 = vmatprep.mubr.f32.mxu0 0.0
        %553 = vmatmul.mubr.f32.gmra.mxu0 %v453
        %v554 = vpop.f32.mrf.mxu0
        %v555 = vadd.f32 %v476, %v554
        %v556 = vpop.f32.mrf.mxu0
        %557 = vmatprep.mubr.f32.mxu0 0.0
        %558 = vmatmul.mubr.f32.gmra.mxu0 %v454
        %v559 = vpop.f32.mrf.mxu0
        %v560 = vadd.f32 %v476, %v559
        %v561 = vpop.f32.mrf.mxu0
        %562 = vdwg.mxu0
        %v563 = vmul.f32 %v545, 0.5
        %v564 = vmul.f32 %v550, 0.5
        %v565 = vmul.f32 %v555, 0.5
        %v566 = vmul.f32 %v560, 0.5
        %v567 = vmul.f32 %v545, 0.70710677
        %v568 = vmul.f32 %v550, 0.70710677
        %v569 = vmul.f32 %v555, 0.70710677
        %v570 = vmul.f32 %v560, 0.70710677
        %v571 = vand.u32 2147483647, %v567
        %v572 = vand.u32 2147483647, %v568
        %v573 = vand.u32 2147483647, %v569
        %v574 = vand.u32 2147483647, %v570
        %v575 = vmul.f32 %v571, 0.3275911
        %v576 = vmul.f32 %v572, 0.3275911
        %v577 = vmul.f32 %v573, 0.3275911
        %v578 = vmul.f32 %v574, 0.3275911
        %v579 = vadd.f32 %v575, 1.0
        %v580 = vadd.f32 %v576, 1.0
        %v581 = vadd.f32 %v577, 1.0
        %v582 = vadd.f32 %v578, 1.0
        %v583 = vrcp.pop %v579
        %v584 = vmul.f32 1.0, %v583
        %v585 = vrcp.pop %v580
        %v586 = vmul.f32 1.0, %v585
        %v587 = vrcp.pop %v581
        %v588 = vmul.f32 1.0, %v587
        %v589 = vrcp.pop %v582
        %v590 = vmul.f32 1.0, %v589
        %v591 = vmul.f32 %v584, 1.0614054
        %v592 = vmul.f32 %v586, 1.0614054
        %v593 = vmul.f32 %v588, 1.0614054
        %v594 = vmul.f32 %v590, 1.0614054
        %v595 = vadd.f32 %v591, -1.4531521
        %v596 = vadd.f32 %v592, -1.4531521
        %v597 = vadd.f32 %v593, -1.4531521
        %v598 = vadd.f32 %v594, -1.4531521
        %v599 = vmul.f32 %v584, %v595
        %v600 = vmul.f32 %v586, %v596
        %v601 = vmul.f32 %v588, %v597
        %v602 = vmul.f32 %v590, %v598
        %v603 = vadd.f32 %v599, 1.4214138
        %v604 = vadd.f32 %v600, 1.4214138
        %v605 = vadd.f32 %v601, 1.4214138
        %v606 = vadd.f32 %v602, 1.4214138
        %v607 = vmul.f32 %v584, %v603
        %v608 = vmul.f32 %v586, %v604
        %v609 = vmul.f32 %v588, %v605
        %v610 = vmul.f32 %v590, %v606
        %v611 = vadd.f32 %v607, -0.28449672
        %v612 = vadd.f32 %v608, -0.28449672
        %v613 = vadd.f32 %v609, -0.28449672
        %v614 = vadd.f32 %v610, -0.28449672
        %v615 = vmul.f32 %v584, %v611
        %v616 = vmul.f32 %v586, %v612
        %v617 = vmul.f32 %v588, %v613
        %v618 = vmul.f32 %v590, %v614
        %v619 = vadd.f32 %v615, 0.2548296
        %v620 = vadd.f32 %v616, 0.2548296
        %v621 = vadd.f32 %v617, 0.2548296
        %v622 = vadd.f32 %v618, 0.2548296
        %v623 = vmul.f32 %v584, %v619
        %v624 = vmul.f32 %v586, %v620
        %v625 = vmul.f32 %v588, %v621
        %v626 = vmul.f32 %v590, %v622
        %v627 = vmul.f32 %v571, %v571
        %v628 = vmul.f32 %v572, %v572
        %v629 = vmul.f32 %v573, %v573
        %v630 = vmul.f32 %v574, %v574
        %v631 = vsub.f32 0.0, %v627
        %v632 = vsub.f32 0.0, %v628
        %v633 = vsub.f32 0.0, %v629
        %v634 = vsub.f32 0.0, %v630
        %v635 = vmul.f32 %v631, 1.442695
        %v636 = vpow.pop %v635
        %v637 = vmul.f32 %v632, 1.442695
        %v638 = vpow.pop %v637
        %v639 = vmul.f32 %v633, 1.442695
        %v640 = vpow.pop %v639
        %v641 = vmul.f32 %v634, 1.442695
        %v642 = vpow.pop %v641
        %v643 = vmul.f32 %v623, %v636
        %v644 = vmul.f32 %v624, %v638
        %v645 = vmul.f32 %v625, %v640
        %v646 = vmul.f32 %v626, %v642
        %v647 = vsub.f32 1.0, %v643
        %v648 = vsub.f32 1.0, %v644
        %v649 = vsub.f32 1.0, %v645
        %v650 = vsub.f32 1.0, %v646
        %vm651 = vcmp.lt.f32.partialorder %v567, 0.0
        %vm652 = vcmp.lt.f32.partialorder %v568, 0.0
        %vm653 = vcmp.lt.f32.partialorder %v569, 0.0
        %vm654 = vcmp.lt.f32.partialorder %v570, 0.0
        %v655 = vsub.f32 0.0, %v647
        %v656 = vsub.f32 0.0, %v648
        %v657 = vsub.f32 0.0, %v649
        %v658 = vsub.f32 0.0, %v650
        %v659 = vsel %vm651, %v655, %v647
        %v660 = vsel %vm652, %v656, %v648
        %v661 = vsel %vm653, %v657, %v649
        %v662 = vsel %vm654, %v658, %v650
        %v663 = vadd.f32 %v659, 1.0
        %v664 = vadd.f32 %v660, 1.0
        %v665 = vadd.f32 %v661, 1.0
        %v666 = vadd.f32 %v662, 1.0
        %v667 = vmul.f32 %v563, %v663
        %v668 = vmul.f32 %v564, %v664
        %v669 = vmul.f32 %v565, %v665
        %v670 = vmul.f32 %v566, %v666
        %v671 = vld [vmem:[#allocation2] sm:$0xff]
        %v672 = vld [vmem:[#allocation2 + $0x8] sm:$0xff]
        %v673 = vld [vmem:[#allocation2 + $0x10] sm:$0xff]
        %v674 = vld [vmem:[#allocation2 + $0x18] sm:$0xff]
        %v675 = vld [vmem:[%s359] sm:$0xff]
        %v676 = vld [vmem:[%s359 + $0x8] sm:$0xff]
        %v677 = vld [vmem:[%s359 + $0x10] sm:$0xff]
        %v678 = vld [vmem:[%s359 + $0x18] sm:$0xff]
        %v679 = vld [vmem:[%s359 + $0x20] sm:$0xff]
        %v680 = vld [vmem:[%s359 + $0x28] sm:$0xff]
        %v681 = vld [vmem:[%s359 + $0x30] sm:$0xff]
        %v682 = vld [vmem:[%s359 + $0x38] sm:$0xff]
        %v683 = vld [vmem:[%s359 + $0x40] sm:$0xff]
        %v684 = vld [vmem:[%s359 + $0x48] sm:$0xff]
        %v685 = vld [vmem:[%s359 + $0x50] sm:$0xff]
        %v686 = vld [vmem:[%s359 + $0x58] sm:$0xff]
        %v687 = vld [vmem:[%s359 + $0x60] sm:$0xff]
        %v688 = vld [vmem:[%s359 + $0x68] sm:$0xff]
        %v689 = vld [vmem:[%s359 + $0x70] sm:$0xff]
        %v690 = vld [vmem:[%s359 + $0x78] sm:$0xff]
        %691 = vmatprep.subr.mxu0 0.0
        %692 = vmatpush1.msra.mxu0 %v690
        %693 = vmatprep.subr.mxu0 0.0
        %694 = vmatpush1.msra.mxu0 %v689
        %695 = vmatprep.subr.mxu0 0.0
        %696 = vmatpush1.msra.mxu0 %v688
        %697 = vmatprep.subr.mxu0 0.0
        %698 = vmatpush1.msra.mxu0 %v687
        %699 = vmatprep.subr.mxu0 0.0
        %700 = vmatpush1.msra.mxu0 %v686
        %701 = vmatprep.subr.mxu0 0.0
        %702 = vmatpush1.msra.mxu0 %v685
        %703 = vmatprep.subr.mxu0 0.0
        %704 = vmatpush1.msra.mxu0 %v684
        %705 = vmatprep.subr.mxu0 0.0
        %706 = vmatpush1.msra.mxu0 %v683
        %707 = vmatprep.subr.mxu0 0.0
        %708 = vmatpush1.msra.mxu0 %v682
        %709 = vmatprep.subr.mxu0 0.0
        %710 = vmatpush1.msra.mxu0 %v681
        %711 = vmatprep.subr.mxu0 0.0
        %712 = vmatpush1.msra.mxu0 %v680
        %713 = vmatprep.subr.mxu0 0.0
        %714 = vmatpush1.msra.mxu0 %v679
        %715 = vmatprep.subr.mxu0 0.0
        %716 = vmatpush1.msra.mxu0 %v678
        %717 = vmatprep.subr.mxu0 0.0
        %718 = vmatpush1.msra.mxu0 %v677
        %719 = vmatprep.subr.mxu0 0.0
        %720 = vmatpush1.msra.mxu0 %v676
        %721 = vmatprep.subr.mxu0 0.0
        %722 = vmatpush1.msra.mxu0 %v675
        %723 = vmatprep.subr.mxu0 0.0
        %724 = vmatpush2.msra.mxu0 0.0
        %725 = vmatprep.subr.mxu0 0.0
        %726 = vmatpush2.msra.mxu0 0.0
        %727 = vmatprep.subr.mxu0 0.0
        %728 = vmatpush2.msra.mxu0 0.0
        %729 = vmatprep.subr.mxu0 0.0
        %730 = vmatpush2.msra.mxu0 0.0
        %731 = vmatprep.subr.mxu0 0.0
        %732 = vmatpush2.msra.mxu0 0.0
        %733 = vmatprep.subr.mxu0 0.0
        %734 = vmatpush2.msra.mxu0 0.0
        %735 = vmatprep.subr.mxu0 0.0
        %736 = vmatpush2.msra.mxu0 0.0
        %737 = vmatprep.subr.mxu0 0.0
        %738 = vmatpush2.msra.mxu0 0.0
        %739 = vmatprep.subr.mxu0 0.0
        %740 = vmatpush2.msra.mxu0 0.0
        %741 = vmatprep.subr.mxu0 0.0
        %742 = vmatpush2.msra.mxu0 0.0
        %743 = vmatprep.subr.mxu0 0.0
        %744 = vmatpush2.msra.mxu0 0.0
        %745 = vmatprep.subr.mxu0 0.0
        %746 = vmatpush2.msra.mxu0 0.0
        %747 = vmatprep.subr.mxu0 0.0
        %748 = vmatpush2.msra.mxu0 0.0
        %749 = vmatprep.subr.mxu0 0.0
        %750 = vmatpush2.msra.mxu0 0.0
        %751 = vmatprep.subr.mxu0 0.0
        %752 = vmatpush2.msra.mxu0 0.0
        %753 = vmatprep.subr.mxu0 0.0
        %754 = vmatpush2.msra.mxu0 0.0
        %755 = vmatprep.mubr.f32.mxu0 0.0
        %756 = vmatmul.mubr.f32.gmra.mxu0 %v667
        %v757 = vpop.f32.mrf.mxu0
        %v758 = vadd.f32 0.0, %v757
        %v759 = vpop.f32.mrf.mxu0
        %760 = vmatprep.mubr.f32.mxu0 0.0
        %761 = vmatmul.mubr.f32.gmra.mxu0 %v668
        %v762 = vpop.f32.mrf.mxu0
        %v763 = vadd.f32 0.0, %v762
        %v764 = vpop.f32.mrf.mxu0
        %765 = vmatprep.mubr.f32.mxu0 0.0
        %766 = vmatmul.mubr.f32.gmra.mxu0 %v669
        %v767 = vpop.f32.mrf.mxu0
        %v768 = vadd.f32 0.0, %v767
        %v769 = vpop.f32.mrf.mxu0
        %770 = vmatprep.mubr.f32.mxu0 0.0
        %771 = vmatmul.mubr.f32.gmra.mxu0 %v670
        %v772 = vpop.f32.mrf.mxu0
        %v773 = vadd.f32 0.0, %v772
        %v774 = vpop.f32.mrf.mxu0
        %775 = vdwg.mxu0
        %v776 = vadd.f32 %v671, %v758
        %v777 = vadd.f32 %v672, %v763
        %v778 = vadd.f32 %v673, %v768
        %v779 = vadd.f32 %v674, %v773
        %780 = vst [vmem:[#allocation2] sm:$0xff] %v776
        %781 = vst [vmem:[#allocation2 + $0x8] sm:$0xff] %v777
        %782 = vst [vmem:[#allocation2 + $0x10] sm:$0xff] %v778
        %783 = vst [vmem:[#allocation2 + $0x18] sm:$0xff] %v779
        // Predicated region
        $region57: #{tpu_custom_call.1} parent=43 // pred_check
          %p784 = pneg %p443
        $region58: #{tpu_custom_call.1} parent=43 // pred_check_branch
          %786 = sbr.rel (%p784) target = $region60
        $region59: #{tpu_custom_call.1} parent=43 // pred_region
          %v787 = vld [vmem:[#allocation2] sm:$0xff]
          %v788 = vld [vmem:[#allocation2 + $0x8] sm:$0xff]
          %v789 = vld [vmem:[#allocation2 + $0x10] sm:$0xff]
          %v790 = vld [vmem:[#allocation2 + $0x18] sm:$0xff]
          %v791 = vld [vmem:[%s440] sm:$0x1]
          %v793 = vlaneseq
          %v794 = vshrl.u32 %v793, 7
          %v795 = vsub.s32 0, %v794
          %v796 = vrot.slane %v791, %v795
          %v798 = vadd.f32 %v787, %v796
          %v799 = vadd.f32 %v788, %v796
          %v800 = vadd.f32 %v789, %v796
          %v801 = vadd.f32 %v790, %v796
          %v802 = vld [vmem:[%s424] sm:$0xff]
          %v803 = vld [vmem:[%s424 + $0x8] sm:$0xff]
          %v804 = vld [vmem:[%s424 + $0x10] sm:$0xff]
          %v805 = vld [vmem:[%s424 + $0x18] sm:$0xff]
          %807 = vset.pattern.permute.xlu0 0
          %808 = vperm.xlu0 %807, %v802
          %v809 = vpop.permute.xlu0 %808
          %812 = vset.pattern.permute.xlu0 0
          %813 = vperm.xlu0 %812, %v803
          %v814 = vpop.permute.xlu0 %813
          %817 = vset.pattern.permute.xlu0 0
          %818 = vperm.xlu0 %817, %v804
          %v819 = vpop.permute.xlu0 %818
          %822 = vset.pattern.permute.xlu0 0
          %823 = vperm.xlu0 %822, %v805
          %v824 = vpop.permute.xlu0 %823
          %v826 = vmul.f32 %v798, %v809
          %v827 = vmul.f32 %v799, %v814
          %v828 = vmul.f32 %v800, %v819
          %v829 = vmul.f32 %v801, %v824
          %830 = vst [vmem:[%s413] sm:$0xff] %v826
          %831 = vst [vmem:[%s413 + $0x8] sm:$0xff] %v827
          %832 = vst [vmem:[%s413 + $0x10] sm:$0xff] %v828
          %833 = vst [vmem:[%s413 + $0x18] sm:$0xff] %v829
        $region60: #{tpu_custom_call.1} parent=43 // pred_fallthru
          _
        %s834 = sand.u32 %s223, 1
        %s835 = scalar_lea.sflag [#allocation7], %s834
        %s836 = sand.u32 %s223, 1
        %s837 = smul.addr %s836, 32
        %s838 = scalar_lea.vmem [#allocation10], %s837
        // Predicated region
        $region61: #{tpu_custom_call.1} parent=43 // pred_check
          %p839 = pneg %p233
        $region62: #{tpu_custom_call.1} parent=43 // pred_check_branch
          %841 = sbr.rel (%p839) target = $region64
        $region63: #{tpu_custom_call.1} parent=43 // pred_region
          %s842 = smul.u32 4, %s37
          %s844 = ssub.s32 512, 512
          %845 = vsyncadd %s835, %s844
          %s846 = smul.addr %s842, 128
          %s847 = scalar_lea.hbm %s7, %s846
          %s848 = sshll.u32 %s838, 4
          %s849 = int_to_ptr.vmem [resolvable:$true] %s848
          %854 = dma.vmem_to_hbm [thread:$0]  %s849, 512, %s847, %s835, 128, 128, 8
        $region64: #{tpu_custom_call.1} parent=43 // pred_fallthru
          _
      $region44: #{tpu_custom_call.1} parent=5 // pred_fallthru
        _
      %p855 = scmp.le.s32.totalorder 2, %s28
      // Predicated region
      $region65: #{tpu_custom_call.1} parent=5 // pred_check
        %p856 = pneg %p855
      $region66: #{tpu_custom_call.1} parent=5 // pred_check_branch
        %858 = sbr.rel (%p856) target = $region68
      $region67: #{tpu_custom_call.1} parent=5 // pred_region
        %s859 = ssub.s32 %s28, 2
        // Predicated region
        $region69: #{tpu_custom_call.1} parent=67 // pred_check
          %p860 = pneg %p239
        $region70: #{tpu_custom_call.1} parent=67 // pred_check_branch
          %862 = sbr.rel (%p860) target = $region72
        $region71: #{tpu_custom_call.1} parent=67 // pred_region
          %s863 = sand.u32 %s224, 1
          %s864 = scalar_lea.sflag [#allocation7], %s863
          %s865 = sand.u32 %s224, 1
          %s866 = smul.addr %s865, 32
          %s867 = scalar_lea.vmem [#allocation10], %s866
          %868 = dma.done %s864, 512
        $region72: #{tpu_custom_call.1} parent=67 // pred_fallthru
          _
      $region68: #{tpu_custom_call.1} parent=5 // pred_fallthru
        _
    $region6: #{tpu_custom_call.1} parent=1 // loop_footer
      %s32 = sadd.s32 1, %s28
    $region7: #{tpu_custom_call.1} parent=1 // loop_footer_branch
      %27 = sbr.rel target = $region3
    $region8: #{tpu_custom_call.1} parent=1 // loop_exit
      _
    %869 = vsyncpa [#allocation6], 1
    %s870 = scalar_lea.sflag [#allocation6], 1
    %871 = vsyncpa %s870, 1
    %872 = vsyncpa [#allocation9], 1
    %s873 = scalar_lea.sflag [#allocation9], 1
    %874 = vsyncpa %s873, 1
    %875 = vsyncpa [#allocation7], 1
    %s876 = scalar_lea.sflag [#allocation7], 1
    %877 = vsyncpa %s876, 1

</llo_original>
